<compile_context>
chip_gen: v5e
topology: v5e:2x2
jax: 0.10.0
libtpu: 0.0.40
codegen_flags: <defaults>
</compile_context>

<pallas_src>
import jax
import jax.numpy as jnp
from jax.experimental import pallas as pl
from jax.experimental.pallas import tpu as pltpu


def _scaled_matmul_kernel(w_ref, s_ref, x_ref, o_ref):
    # Fold per-channel scale into the small weight tile, then one MXU matmul
    # over channels: out = (W * scale) @ X. Keep the fold in-kernel (it is
    # ~tens of vreg VALU ops, fully hidden under the per-step DMA).
    ws = w_ref[...] * s_ref[...]                          # (co_blk, Cin) * (1, Cin)
    o_ref[...] = jnp.dot(
        ws, x_ref[...], preferred_element_type=jnp.float32
    ).astype(o_ref.dtype)


def _pick_block_m(m_total, cap):
    """Lane-dense M tiling: full extent if small, else a 128-multiple block."""
    cap = max(128, (int(cap) // 128) * 128)   # validate/round cap to 128-multiple
    if m_total <= cap:
        return m_total                        # single full-extent block
    # Prefer a 128-multiple that divides m_total evenly (no ragged tail).
    bm = cap
    while bm >= 128:
        if m_total % bm == 0:
            return bm
        bm -= 128
    # No clean divisor: use the cap; the ragged last block is handled with
    # masked stores (correct here since the kernel never reduces over M).
    return cap


def scale_conv1x1(x_nchw, scale_nc11, w_oihw, *, block_m_cap=2048):
    """out = Conv2d(Cin->Cout, 1x1, bias=False)(scale * x), all in NCHW.

    x_nchw    : (N, Cin, H, W)
    scale_nc11: (1, Cin, 1, 1)
    w_oihw    : (Cout, Cin, 1, 1)
    returns   : (N, Cout, H, W)
    """
    N, Cin, H, W = x_nchw.shape
    Cout = w_oihw.shape[0]
    Mhw = H * W

    # Pure reshapes (views) -- NCHW already has channels ahead of the spatial
    # axis, so the 1x1 conv is (Cout,Cin) @ (Cin, H*W) per image.
    x3d = x_nchw.reshape(N, Cin, Mhw)             # (N, Cin, M)
    s2d = scale_nc11.reshape(1, Cin)              # (1, Cin)
    w2d = w_oihw.reshape(Cout, Cin)               # (Cout, Cin)

    block_m = _pick_block_m(Mhw, block_m_cap)
    m_blocks = -(-Mhw // block_m)

    # v7x has 2 TensorCores: if the (N, M-blocks) grid offers < 2 units of
    # parallel work, split Cout into two sublane-aligned halves so both cores
    # can work. Costs one extra (cheap) grid step on single-core chips.
    split_cout = (N * m_blocks < 2) and (Cout % 2 == 0) and ((Cout // 2) % 8 == 0)
    block_co = Cout // 2 if split_cout else Cout
    co_blocks = Cout // block_co

    grid = (N, co_blocks, m_blocks)

    dsize = jnp.dtype(x_nchw.dtype).itemsize
    cost = pl.CostEstimate(
        flops=2 * N * Mhw * Cin * Cout + Cout * Cin,
        transcendentals=0,
        bytes_accessed=dsize
        * (N * Cin * Mhw + Cout * Cin + Cin + N * Cout * Mhw),
    )

    out3d = pl.pallas_call(
        _scaled_matmul_kernel,
        out_shape=jax.ShapeDtypeStruct((N, Cout, Mhw), x_nchw.dtype),
        grid=grid,
        in_specs=[
            # Weight slice: depends only on the Cout-block axis (stays
            # resident across the M axis, which iterates fastest).
            pl.BlockSpec((block_co, Cin), lambda n, j, i: (j, 0)),
            # Per-channel scale: fully resident.
            pl.BlockSpec((1, Cin), lambda n, j, i: (0, 0)),
            # Activations: resident across the Cout-block axis.
            pl.BlockSpec((None, Cin, block_m), lambda n, j, i: (n, 0, i)),
        ],
        out_specs=pl.BlockSpec((None, block_co, block_m), lambda n, j, i: (n, j, i)),
        compiler_params=pltpu.CompilerParams(
            dimension_semantics=("parallel", "parallel", "parallel"),
        ),
        cost_estimate=cost,
    )(w2d, s2d, x3d)

    # Pure reshape back to NCHW -- no transpose needed.
    return out3d.reshape(N, Cout, H, W)


if __name__ == "__main__":
    key = jax.random.PRNGKey(0)
    k1, k2, k3 = jax.random.split(key, 3)

    # Shapes implied by the module's forward.
    N, Cin, H, W, Cout = 1, 320, 14, 14, 160

    x90 = jax.random.normal(k1, (N, Cin, H, W), dtype=jnp.float32)   # activations
    x95 = jax.random.normal(k2, (1, Cin, 1, 1), dtype=jnp.float32)   # per-channel scale

    # Deterministic Conv2d(320, 160, 1x1, bias=False) weight init (synthetic).
    fan_in = Cin * 1 * 1
    bound = 1.0 / jnp.sqrt(jnp.float32(fan_in))
    w = jax.random.uniform(
        k3, (Cout, Cin, 1, 1), dtype=jnp.float32, minval=-bound, maxval=bound
    )

    out = scale_conv1x1(x90, x95, w)
    jax.block_until_ready(out)

    # Reference check in plain JAX (same math: broadcast mul + 1x1 conv).
    ref = jnp.einsum("nchw,oc->nohw", x95 * x90, w.reshape(Cout, Cin))
    assert out.shape == (N, Cout, H, W)
    assert jnp.allclose(out, ref, atol=1e-4, rtol=1e-4)

    print("KERNEL_OK")
</pallas_src>

<mosaic_0001>
module attributes {stable_mosaic.version = 11 : i64} {
  func.func @_scaled_matmul_kernel(%arg0: i32, %arg1: i32, %arg2: i32, %arg3: memref<80x320xf32, #tpu.memory_space<vmem>>, %arg4: memref<1x320xf32, #tpu.memory_space<vmem>>, %arg5: memref<1x320x196xf32, #tpu.memory_space<vmem>>, %arg6: memref<1x80x196xf32, #tpu.memory_space<vmem>>) attributes {dimension_semantics = [#tpu.dimension_semantics<parallel>, #tpu.dimension_semantics<parallel>, #tpu.dimension_semantics<parallel>], iteration_bounds = array<i64: 1, 2, 1>, scalar_prefetch = 0 : i64, scratch_operands = 0 : i64, tpu.core_type = #tpu.core_type<tc>, window_params = [{transform_indices = @transform_0, window_bounds = array<i64: 80, 320>}, {pipeline_mode = #tpu.pipeline_mode<synchronous>, transform_indices = @transform_1, window_bounds = array<i64: 1, 320>}, {transform_indices = @transform_2, window_bounds = array<i64: 1, 320, 196>}, {transform_indices = @transform_3, window_bounds = array<i64: 1, 80, 196>}]} {
    %c0 = arith.constant 0 : index
    %c0_0 = arith.constant 0 : index
    %0 = vector.load %arg3[%c0, %c0_0] : memref<80x320xf32, #tpu.memory_space<vmem>>, vector<80x320xf32>
    %c0_1 = arith.constant 0 : index
    %c0_2 = arith.constant 0 : index
    %1 = vector.load %arg4[%c0_1, %c0_2] : memref<1x320xf32, #tpu.memory_space<vmem>>, vector<1x320xf32>
    %2 = vector.broadcast %1 : vector<1x320xf32> to vector<80x320xf32>
    %3 = arith.mulf %0, %2 : vector<80x320xf32>
    %c0_3 = arith.constant 0 : index
    %c0_4 = arith.constant 0 : index
    %c0_5 = arith.constant 0 : index
    %4 = vector.load %arg5[%c0_3, %c0_4, %c0_5] : memref<1x320x196xf32, #tpu.memory_space<vmem>>, vector<1x320x196xf32>
    %5 = vector.shape_cast %4 : vector<1x320x196xf32> to vector<320x196xf32>
    %cst = arith.constant dense<0.000000e+00> : vector<80x196xf32>
    %6 = tpu.matmul %3, %5, %cst {dimension_numbers = #tpu.dot_dimension_numbers<[1], [0], [0], [1], [0, 0, 1, 1], [], []>} : vector<80x320xf32>, vector<320x196xf32>, vector<80x196xf32> -> vector<80x196xf32>
    %c0_6 = arith.constant 0 : index
    %c0_7 = arith.constant 0 : index
    %c0_8 = arith.constant 0 : index
    %7 = vector.load %arg6[%c0_6, %c0_7, %c0_8] : memref<1x80x196xf32, #tpu.memory_space<vmem>>, vector<1x80x196xf32>
    %8 = vector.shape_cast %7 : vector<1x80x196xf32> to vector<80x196xf32>
    %9 = vector.shape_cast %6 : vector<80x196xf32> to vector<1x80x196xf32>
    tpu.vector_store %arg6[%c0_6, %c0_7, %c0_8], %9 {strides = array<i32>} : memref<1x80x196xf32, #tpu.memory_space<vmem>>, vector<1x80x196xf32>,
    return
  }
  func.func @transform_0(%arg0: i32, %arg1: i32, %arg2: i32) -> (i32, i32) {
    %c0_i32 = arith.constant 0 : i32
    %c0_i32_0 = arith.constant 0 : i32
    return %arg1, %c0_i32 : i32, i32
  }
  func.func @transform_1(%arg0: i32, %arg1: i32, %arg2: i32) -> (i32, i32) {
    %c0_i32 = arith.constant 0 : i32
    %c0_i32_0 = arith.constant 0 : i32
    %c0_i32_1 = arith.constant 0 : i32
    return %c0_i32, %c0_i32_0 : i32, i32
  }
  func.func @transform_2(%arg0: i32, %arg1: i32, %arg2: i32) -> (i32, i32, i32) {
    %c0_i32 = arith.constant 0 : i32
    %c0_i32_0 = arith.constant 0 : i32
    return %arg0, %c0_i32, %arg2 : i32, i32, i32
  }
  func.func @transform_3(%arg0: i32, %arg1: i32, %arg2: i32) -> (i32, i32, i32) {
    %c0_i32 = arith.constant 0 : i32
    return %arg0, %arg1, %arg2 : i32, i32, i32
  }
}

</mosaic_0001>

<llo_original>
// kernel: tpu_custom_call.1
$region0: #{tpu_custom_call.1}
  #allocation0 [shape = 'u32[]', space=smem, size = 0x4, offset = 0x4, fixed_abs, tag = 'smem constant byte address 0x4 - core index']
  #allocation1 [shape = 'u32[72,128]{1,0:T(1,128)}', space=vmem, size = 0x9000, scoped, tag = 'internal scratch']
  %s0 = inlined_call_operand.vmem [shape: f32[160,320], index: 0, kind: input, shape index: {}]
  %s1 = inlined_call_operand.vmem [shape: f32[1,320], index: 1, kind: input, shape index: {}]
  %s2 = inlined_call_operand.vmem [shape: f32[1,320,196], index: 2, kind: input, shape index: {}]
  %s3 = inlined_call_operand.hbm [shape: f32[1,160,196], index: 3, kind: output, shape index: {}]
  %s4 = sld [smem:[#allocation0]]
  $region45: #{tpu_custom_call.1} parent=0
    _
  %s6 = ssub.s32 1, %s4
  %s7 = scalar_select 0, %s6, %s4
  $region1: #{tpu_custom_call.1} parent=0
    #allocation2 [shape = 'u8[163840]{0}', space=vmem, size = 0x28000, scoped, tag = 'output window, operand 0']
    #allocation3 [shape = 's32[2]{0}', space=sflag, size = 0x8, scoped, tag = 'scoped memory for tpu_custom_call.1']
    %8 = vsyncpa [#allocation3], 0
    %s9 = scalar_lea.sflag [#allocation3], 1
    %10 = vsyncpa %s9, 0
    loop: start=0, step=1, limit=4
    $region2: #{tpu_custom_call.1} parent=1 // loop_pre_header
      _
    $region3: #{tpu_custom_call.1} parent=1 // loop_header
      %s12 = sphi 0, %s16
      %p13 = scmp.ge.s32.totalorder %s12, 4
      %s19 = sphi 0, %s38
      %s20 = sphi 0, %s34
      %s21 = sphi 0, %s30
      %s22 = sphi 0, %s19
      %s23 = sphi 0, %s20
      %s24 = sphi 0, %s21
      %s25 = sphi 0, %s22
      %s26 = sphi 0, %s23
      %s27 = sphi 0, %s24
      %s41 = sphi 0, %s43
      %s44 = sphi 0, %s41
      %s45 = sphi 0, %s44
      %s61 = sphi 0, %s45
      %s65 = sphi 0, %s65
      %s67 = sphi 0, %s65
      %s68 = sphi 0, %s67
      %s82 = sphi 0, %s68
      %s90 = sphi 0, %s92
      %s93 = sphi 0, %s90
      %s94 = sphi 0, %s93
      %s110 = sphi 0, %s94
      %s120 = sphi 0, %s122
      %s123 = sphi 0, %s120
      %s124 = sphi 0, %s123
      %s140 = sphi 0, %s124
    $region4: #{tpu_custom_call.1} parent=1 // loop_header_branch
      %15 = sbr.rel (%p13) target = $region8
    $region5: #{tpu_custom_call.1} parent=1 // loop_body
      %s17 = ssub.s32 %s12, 1
      %s18 = ssub.s32 %s12, 2
      %s28 = sadd.s32 1, %s21
      %p29 = scmp.ge.s32.totalorder %s28, 1
      %s30 = scalar_select %p29, 0, %s28
      %s31 = sadd.s32 1, %s20
      %s32 = scalar_select %p29, %s31, %s20
      %p33 = scmp.ge.s32.totalorder %s32, 2
      %s34 = scalar_select %p33, 0, %s32
      %s35 = sadd.s32 1, %s19
      %s36 = scalar_select %p33, %s35, %s19
      %p37 = scmp.ge.s32.totalorder %s36, 1
      %s38 = scalar_select %p37, 0, %s36
      %s39 = ssub.s32 %s20, %s34
      %p40 = scmp.eq.s32.totalorder %s39, 0
      %s42 = sadd.s32 %s41, 1
      %s43 = scalar_select %p40, %s41, %s42
      %p46 = pneg %p40
      %p47 = scmp.eq.s32.totalorder %s12, 1
      %p48 = por %p46, %p47
      %p49 = scmp.ne.s32.totalorder %s41, %s44
      %p50 = scmp.eq.s32.totalorder %s12, 0
      %p51 = por %p49, %p50
      %p52 = scmp.ne.s32.totalorder %s41, %s44
      %p53 = scmp.eq.s32.totalorder %s17, 1
      %p54 = por %p52, %p53
      %p55 = scmp.ne.s32.totalorder %s44, %s45
      %p56 = scmp.eq.s32.totalorder %s17, 0
      %p57 = por %p55, %p56
      %p58 = scmp.ne.s32.totalorder %s44, %s45
      %p59 = scmp.eq.s32.totalorder %s18, 1
      %p60 = por %p58, %p59
      %p62 = scmp.ne.s32.totalorder %s45, %s61
      %p63 = scmp.eq.s32.totalorder %s18, 0
      %p64 = por %p62, %p63
      %s66 = sadd.s32 %s65, 1
      %p69 = scmp.eq.s32.totalorder %s12, 1
      %p70 = scmp.ne.s32.totalorder %s65, %s67
      %p71 = scmp.eq.s32.totalorder %s12, 0
      %p72 = por %p70, %p71
      %p73 = scmp.ne.s32.totalorder %s65, %s67
      %p74 = scmp.eq.s32.totalorder %s17, 1
      %p75 = por %p73, %p74
      %p76 = scmp.ne.s32.totalorder %s67, %s68
      %p77 = scmp.eq.s32.totalorder %s17, 0
      %p78 = por %p76, %p77
      %p79 = scmp.ne.s32.totalorder %s67, %s68
      %p80 = scmp.eq.s32.totalorder %s18, 1
      %p81 = por %p79, %p80
      %p83 = scmp.ne.s32.totalorder %s68, %s82
      %p84 = scmp.eq.s32.totalorder %s18, 0
      %p85 = por %p83, %p84
      %s86 = ssub.s32 %s19, %s38
      %s87 = ssub.s32 %s21, %s30
      %s88 = sor.u32 %s86, %s87
      %p89 = scmp.eq.s32.totalorder %s88, 0
      %s91 = sadd.s32 %s90, 1
      %s92 = scalar_select %p89, %s90, %s91
      %p95 = pneg %p89
      %p96 = scmp.eq.s32.totalorder %s12, 1
      %p97 = por %p95, %p96
      %p98 = scmp.ne.s32.totalorder %s90, %s93
      %p99 = scmp.eq.s32.totalorder %s12, 0
      %p100 = por %p98, %p99
      %p101 = scmp.ne.s32.totalorder %s90, %s93
      %p102 = scmp.eq.s32.totalorder %s17, 1
      %p103 = por %p101, %p102
      %p104 = scmp.ne.s32.totalorder %s93, %s94
      %p105 = scmp.eq.s32.totalorder %s17, 0
      %p106 = por %p104, %p105
      %p107 = scmp.ne.s32.totalorder %s93, %s94
      %p108 = scmp.eq.s32.totalorder %s18, 1
      %p109 = por %p107, %p108
      %p111 = scmp.ne.s32.totalorder %s94, %s110
      %p112 = scmp.eq.s32.totalorder %s18, 0
      %p113 = por %p111, %p112
      %s114 = ssub.s32 %s19, %s38
      %s115 = ssub.s32 %s20, %s34
      %s116 = sor.u32 %s114, %s115
      %s117 = ssub.s32 %s21, %s30
      %s118 = sor.u32 %s116, %s117
      %p119 = scmp.eq.s32.totalorder %s118, 0
      %s121 = sadd.s32 %s120, 1
      %s122 = scalar_select %p119, %s120, %s121
      %p125 = pneg %p119
      %p126 = scmp.eq.s32.totalorder %s12, 1
      %p127 = por %p125, %p126
      %p128 = scmp.ne.s32.totalorder %s120, %s123
      %p129 = scmp.eq.s32.totalorder %s12, 0
      %p130 = por %p128, %p129
      %p131 = scmp.ne.s32.totalorder %s120, %s123
      %p132 = scmp.eq.s32.totalorder %s17, 1
      %p133 = por %p131, %p132
      %p134 = scmp.ne.s32.totalorder %s123, %s124
      %p135 = scmp.eq.s32.totalorder %s17, 0
      %p136 = por %p134, %p135
      %p137 = scmp.ne.s32.totalorder %s123, %s124
      %p138 = scmp.eq.s32.totalorder %s18, 1
      %p139 = por %p137, %p138
      %p141 = scmp.ne.s32.totalorder %s124, %s140
      %p142 = scmp.eq.s32.totalorder %s18, 0
      %p143 = por %p141, %p142
      %p144 = scmp.le.s32.totalorder 1, %s12
      %p145 = scmp.lt.s32.totalorder %s12, 3
      %p146 = pnand %p144, %p145
      %p147 = pneg %p146
      // Predicated region
      $region9: #{tpu_custom_call.1} parent=5 // pred_check
        _
      $region10: #{tpu_custom_call.1} parent=5 // pred_check_branch
        %149 = sbr.rel (%p146) target = $region12
      $region11: #{tpu_custom_call.1} parent=5 // pred_region
        %s150 = ssub.s32 %s12, 1
        // Predicated region
        $region13: #{tpu_custom_call.1} parent=11 // pred_check
          %p151 = pneg %p78
        $region14: #{tpu_custom_call.1} parent=11 // pred_check_branch
          %153 = sbr.rel (%p151) target = $region16
        $region15: #{tpu_custom_call.1} parent=11 // pred_region
          _
        $region16: #{tpu_custom_call.1} parent=11 // pred_fallthru
          _
        // Predicated region
        $region17: #{tpu_custom_call.1} parent=11 // pred_check
          %p154 = pneg %p106
        $region18: #{tpu_custom_call.1} parent=11 // pred_check_branch
          %156 = sbr.rel (%p154) target = $region20
        $region19: #{tpu_custom_call.1} parent=11 // pred_region
          %s157 = smul.u32 2, %s24
          %p158 = scmp.lt.s32.totalorder %s22, 0
          %s159 = scalar_select %p158, %s22, 0
          %p160 = scmp.lt.s32.totalorder %s157, 1
          %s161 = scalar_select %p160, %s157, 1
          %s162 = smul.addr %s159, 80
          %s163 = sadd.s32 %s161, %s162
          %s164 = smul.addr %s163, 8
          %s165 = scalar_lea.vmem %s2, %s164
          %s166 = smul.u32 2, %s24
        $region20: #{tpu_custom_call.1} parent=11 // pred_fallthru
          _
      $region12: #{tpu_custom_call.1} parent=5 // pred_fallthru
        _
      %p167 = scmp.lt.s32.totalorder %s12, 2
      // Predicated region
      $region21: #{tpu_custom_call.1} parent=5 // pred_check
        %p168 = pneg %p167
      $region22: #{tpu_custom_call.1} parent=5 // pred_check_branch
        %170 = sbr.rel (%p168) target = $region24
      $region23: #{tpu_custom_call.1} parent=5 // pred_region
        // Predicated region
        $region25: #{tpu_custom_call.1} parent=23 // pred_check
          %p171 = pneg %p51
        $region26: #{tpu_custom_call.1} parent=23 // pred_check_branch
          %173 = sbr.rel (%p171) target = $region28
        $region27: #{tpu_custom_call.1} parent=23 // pred_region
          %s174 = smul.u32 10, %s20
          %p175 = scmp.lt.s32.totalorder %s174, 19
          %s176 = scalar_select %p175, %s174, 19
          %s177 = smul.addr %s176, 3
          %s178 = smul.addr %s177, 8
          %s179 = scalar_lea.vmem %s0, %s178
          %s180 = smul.u32 10, %s20
        $region28: #{tpu_custom_call.1} parent=23 // pred_fallthru
          _
      $region24: #{tpu_custom_call.1} parent=5 // pred_fallthru
        _
      %p181 = scmp.le.s32.totalorder 1, %s12
      %p182 = scmp.lt.s32.totalorder %s12, 3
      %p183 = pnand %p181, %p182
      %p184 = pneg %p183
      // Predicated region
      $region29: #{tpu_custom_call.1} parent=5 // pred_check
        _
      $region30: #{tpu_custom_call.1} parent=5 // pred_check_branch
        %186 = sbr.rel (%p183) target = $region32
      $region31: #{tpu_custom_call.1} parent=5 // pred_region
        %s187 = ssub.s32 %s12, 1
        %s188 = smul.u32 10, %s23
        %p189 = scmp.lt.s32.totalorder %s188, 19
        %s190 = scalar_select %p189, %s188, 19
        %s191 = smul.addr %s190, 3
        %s192 = smul.addr %s191, 8
        %s193 = scalar_lea.vmem %s0, %s192
        %p194 = pneg %p57
        %p195 = pneg %p54
        %p196 = pneg %p78
        %p197 = pneg %p75
        %s198 = smul.u32 2, %s24
        %p199 = scmp.lt.s32.totalorder %s22, 0
        %s200 = scalar_select %p199, %s22, 0
        %p201 = scmp.lt.s32.totalorder %s198, 1
        %s202 = scalar_select %p201, %s198, 1
        %s203 = smul.addr %s200, 80
        %s204 = sadd.s32 %s202, %s203
        %s205 = smul.addr %s204, 8
        %s206 = scalar_lea.vmem %s2, %s205
        %p207 = pneg %p106
        %p208 = pneg %p103
        %p209 = pneg %p136
        %p210 = pneg %p133
        %s211 = sand.u32 %s123, 1
        %s212 = scalar_lea.sflag [#allocation3], %s211
        %s213 = sand.u32 %s123, 1
        %s214 = smul.addr %s213, 160
        %s215 = scalar_lea.vmem [#allocation2], %s214
        %s216 = smul.u32 10, %s23
        %p217 = scmp.lt.s32.totalorder %s216, 19
        %s218 = scalar_select %p217, %s216, 19
        %s219 = smul.addr %s218, 3
        %s220 = smul.addr %s219, 8
        %s221 = scalar_lea.vmem %s0, %s220
        %s222 = smul.u32 10, %s23
        %s223 = smul.u32 2, %s24
        %p224 = scmp.lt.s32.totalorder %s22, 0
        %s225 = scalar_select %p224, %s22, 0
        %p226 = scmp.lt.s32.totalorder %s223, 1
        %s227 = scalar_select %p226, %s223, 1
        %s228 = smul.addr %s225, 80
        %s229 = sadd.s32 %s227, %s228
        %s230 = smul.addr %s229, 8
        %s231 = scalar_lea.vmem %s2, %s230
        %s232 = smul.u32 2, %s24
        %s233 = smul.u32 10, %s23
        %s234 = smul.u32 2, %s24
        %v235 = vld [vmem:[%s221] sm:$0xff]
        %v236 = vld [vmem:[%s221 + $0x8] sm:$0xff]
        %v237 = vld [vmem:[%s221 + $0x10] sm:$0xff]
        %v238 = vld [vmem:[%s221 + $0x18] sm:$0xff]
        %v239 = vld [vmem:[%s221 + $0x20] sm:$0xff]
        %v240 = vld [vmem:[%s221 + $0x28] sm:$0xff]
        %v241 = vld [vmem:[%s221 + $0x30] sm:$0xff]
        %v242 = vld [vmem:[%s221 + $0x38] sm:$0xff]
        %v243 = vld [vmem:[%s221 + $0x40] sm:$0xff]
        %v244 = vld [vmem:[%s221 + $0x48] sm:$0xff]
        %v245 = vld [vmem:[%s221 + $0x50] sm:$0xff]
        %v246 = vld [vmem:[%s221 + $0x58] sm:$0xff]
        %v247 = vld [vmem:[%s221 + $0x60] sm:$0xff]
        %v248 = vld [vmem:[%s221 + $0x68] sm:$0xff]
        %v249 = vld [vmem:[%s221 + $0x70] sm:$0xff]
        %v250 = vld [vmem:[%s221 + $0x78] sm:$0xff]
        %v251 = vld [vmem:[%s221 + $0x80] sm:$0xff]
        %v252 = vld [vmem:[%s221 + $0x88] sm:$0xff]
        %v253 = vld [vmem:[%s221 + $0x90] sm:$0xff]
        %v254 = vld [vmem:[%s221 + $0x98] sm:$0xff]
        %v255 = vld [vmem:[%s221 + $0xa0] sm:$0xff]
        %v256 = vld [vmem:[%s221 + $0xa8] sm:$0xff]
        %v257 = vld [vmem:[%s221 + $0xb0] sm:$0xff]
        %v258 = vld [vmem:[%s221 + $0xb8] sm:$0xff]
        %v259 = vld [vmem:[%s221 + $0xc0] sm:$0xff]
        %v260 = vld [vmem:[%s221 + $0xc8] sm:$0xff]
        %v261 = vld [vmem:[%s221 + $0xd0] sm:$0xff]
        %v262 = vld [vmem:[%s221 + $0xd8] sm:$0xff]
        %v263 = vld [vmem:[%s221 + $0xe0] sm:$0xff]
        %v264 = vld [vmem:[%s221 + $0xe8] sm:$0xff]
        %v265 = vld [vmem:[%s1] sm:$0x7]
        %v267 = vperm.slane %v265, 0
        %v268 = vperm.slane %v265, 1
        %v269 = vperm.slane %v265, 2
        %v273 = vmul.f32 %v235, %v267
        %v274 = vmul.f32 %v236, %v268
        %v275 = vmul.f32 %v237, %v269
        %v276 = vmul.f32 %v238, %v267
        %v277 = vmul.f32 %v239, %v268
        %v278 = vmul.f32 %v240, %v269
        %v279 = vmul.f32 %v241, %v267
        %v280 = vmul.f32 %v242, %v268
        %v281 = vmul.f32 %v243, %v269
        %v282 = vmul.f32 %v244, %v267
        %v283 = vmul.f32 %v245, %v268
        %v284 = vmul.f32 %v246, %v269
        %v285 = vmul.f32 %v247, %v267
        %v286 = vmul.f32 %v248, %v268
        %v287 = vmul.f32 %v249, %v269
        %v288 = vmul.f32 %v250, %v267
        %v289 = vmul.f32 %v251, %v268
        %v290 = vmul.f32 %v252, %v269
        %v291 = vmul.f32 %v253, %v267
        %v292 = vmul.f32 %v254, %v268
        %v293 = vmul.f32 %v255, %v269
        %v294 = vmul.f32 %v256, %v267
        %v295 = vmul.f32 %v257, %v268
        %v296 = vmul.f32 %v258, %v269
        %v297 = vmul.f32 %v259, %v267
        %v298 = vmul.f32 %v260, %v268
        %v299 = vmul.f32 %v261, %v269
        %v300 = vmul.f32 %v262, %v267
        %v301 = vmul.f32 %v263, %v268
        %v302 = vmul.f32 %v264, %v269
        %v303 = vld [vmem:[%s231] sm:$0xff]
        %v304 = vld [vmem:[%s231 + $0x8] sm:$0xff]
        %v305 = vld [vmem:[%s231 + $0x10] sm:$0xff]
        %v306 = vld [vmem:[%s231 + $0x18] sm:$0xff]
        %v307 = vld [vmem:[%s231 + $0x20] sm:$0xff]
        %v308 = vld [vmem:[%s231 + $0x28] sm:$0xff]
        %v309 = vld [vmem:[%s231 + $0x30] sm:$0xff]
        %v310 = vld [vmem:[%s231 + $0x38] sm:$0xff]
        %v311 = vld [vmem:[%s231 + $0x40] sm:$0xff]
        %v312 = vld [vmem:[%s231 + $0x48] sm:$0xff]
        %v313 = vld [vmem:[%s231 + $0x50] sm:$0xff]
        %v314 = vld [vmem:[%s231 + $0x58] sm:$0xff]
        %v315 = vld [vmem:[%s231 + $0x60] sm:$0xff]
        %v316 = vld [vmem:[%s231 + $0x68] sm:$0xff]
        %v317 = vld [vmem:[%s231 + $0x70] sm:$0xff]
        %v318 = vld [vmem:[%s231 + $0x78] sm:$0xff]
        %v319 = vld [vmem:[%s231 + $0x80] sm:$0xff]
        %v320 = vld [vmem:[%s231 + $0x88] sm:$0xff]
        %v321 = vld [vmem:[%s231 + $0x90] sm:$0xff]
        %v322 = vld [vmem:[%s231 + $0x98] sm:$0xff]
        %v323 = vld [vmem:[%s231 + $0xa0] sm:$0xff]
        %v324 = vld [vmem:[%s231 + $0xa8] sm:$0xff]
        %v325 = vld [vmem:[%s231 + $0xb0] sm:$0xff]
        %v326 = vld [vmem:[%s231 + $0xb8] sm:$0xff]
        %v327 = vld [vmem:[%s231 + $0xc0] sm:$0xff]
        %v328 = vld [vmem:[%s231 + $0xc8] sm:$0xff]
        %v329 = vld [vmem:[%s231 + $0xd0] sm:$0xff]
        %v330 = vld [vmem:[%s231 + $0xd8] sm:$0xff]
        %v331 = vld [vmem:[%s231 + $0xe0] sm:$0xff]
        %v332 = vld [vmem:[%s231 + $0xe8] sm:$0xff]
        %v333 = vld [vmem:[%s231 + $0xf0] sm:$0xff]
        %v334 = vld [vmem:[%s231 + $0xf8] sm:$0xff]
        %v335 = vld [vmem:[%s231 + $0x100] sm:$0xff]
        %v336 = vld [vmem:[%s231 + $0x108] sm:$0xff]
        %v337 = vld [vmem:[%s231 + $0x110] sm:$0xff]
        %v338 = vld [vmem:[%s231 + $0x118] sm:$0xff]
        %v339 = vld [vmem:[%s231 + $0x120] sm:$0xff]
        %v340 = vld [vmem:[%s231 + $0x128] sm:$0xff]
        %v341 = vld [vmem:[%s231 + $0x130] sm:$0xff]
        %v342 = vld [vmem:[%s231 + $0x138] sm:$0xff]
        %v343 = vld [vmem:[%s231 + $0x140] sm:$0xff]
        %v344 = vld [vmem:[%s231 + $0x148] sm:$0xff]
        %v345 = vld [vmem:[%s231 + $0x150] sm:$0xff]
        %v346 = vld [vmem:[%s231 + $0x158] sm:$0xff]
        %v347 = vld [vmem:[%s231 + $0x160] sm:$0xff]
        %v348 = vld [vmem:[%s231 + $0x168] sm:$0xff]
        %v349 = vld [vmem:[%s231 + $0x170] sm:$0xff]
        %v350 = vld [vmem:[%s231 + $0x178] sm:$0xff]
        %v351 = vld [vmem:[%s231 + $0x180] sm:$0xff]
        %v352 = vld [vmem:[%s231 + $0x188] sm:$0xff]
        %v353 = vld [vmem:[%s231 + $0x190] sm:$0xff]
        %v354 = vld [vmem:[%s231 + $0x198] sm:$0xff]
        %v355 = vld [vmem:[%s231 + $0x1a0] sm:$0xff]
        %v356 = vld [vmem:[%s231 + $0x1a8] sm:$0xff]
        %v357 = vld [vmem:[%s231 + $0x1b0] sm:$0xff]
        %v358 = vld [vmem:[%s231 + $0x1b8] sm:$0xff]
        %v359 = vld [vmem:[%s231 + $0x1c0] sm:$0xff]
        %v360 = vld [vmem:[%s231 + $0x1c8] sm:$0xff]
        %v361 = vld [vmem:[%s231 + $0x1d0] sm:$0xff]
        %v362 = vld [vmem:[%s231 + $0x1d8] sm:$0xff]
        %v363 = vld [vmem:[%s231 + $0x1e0] sm:$0xff]
        %v364 = vld [vmem:[%s231 + $0x1e8] sm:$0xff]
        %v365 = vld [vmem:[%s231 + $0x1f0] sm:$0xff]
        %v366 = vld [vmem:[%s231 + $0x1f8] sm:$0xff]
        %v367 = vld [vmem:[%s231 + $0x200] sm:$0xff]
        %v368 = vld [vmem:[%s231 + $0x208] sm:$0xff]
        %v369 = vld [vmem:[%s231 + $0x210] sm:$0xff]
        %v370 = vld [vmem:[%s231 + $0x218] sm:$0xff]
        %v371 = vld [vmem:[%s231 + $0x220] sm:$0xff]
        %v372 = vld [vmem:[%s231 + $0x228] sm:$0xff]
        %v373 = vld [vmem:[%s231 + $0x230] sm:$0xff]
        %v374 = vld [vmem:[%s231 + $0x238] sm:$0xff]
        %v375 = vld [vmem:[%s231 + $0x240] sm:$0xff]
        %v376 = vld [vmem:[%s231 + $0x248] sm:$0xff]
        %v377 = vld [vmem:[%s231 + $0x250] sm:$0xff]
        %v378 = vld [vmem:[%s231 + $0x258] sm:$0xff]
        %v379 = vld [vmem:[%s231 + $0x260] sm:$0xff]
        %v380 = vld [vmem:[%s231 + $0x268] sm:$0xff]
        %v381 = vld [vmem:[%s231 + $0x270] sm:$0xff]
        %v382 = vld [vmem:[%s231 + $0x278] sm:$0xff]
        %vm383 = vcmask 523264
        %v385 = vsel %vm383, %v275, 0
        %v388 = vsel %vm383, %v278, 0
        %v391 = vsel %vm383, %v281, 0
        %v394 = vsel %vm383, %v284, 0
        %v397 = vsel %vm383, %v287, 0
        %v400 = vsel %vm383, %v290, 0
        %v403 = vsel %vm383, %v293, 0
        %v406 = vsel %vm383, %v296, 0
        %v409 = vsel %vm383, %v299, 0
        %v412 = vsel %vm383, %v302, 0
        %414 = vmatpush.msra.mxu0 %v333
        %415 = vmatpush.msra.mxu0 %v331
        %416 = vmatpush.msra.mxu0 %v329
        %417 = vmatpush.msra.mxu0 %v327
        %418 = vmatpush.msra.mxu0 %v325
        %419 = vmatpush.msra.mxu0 %v323
        %420 = vmatpush.msra.mxu0 %v321
        %421 = vmatpush.msra.mxu0 %v319
        %422 = vmatpush.msra.mxu0 %v317
        %423 = vmatpush.msra.mxu0 %v315
        %424 = vmatpush.msra.mxu0 %v313
        %425 = vmatpush.msra.mxu0 %v311
        %426 = vmatpush.msra.mxu0 %v309
        %427 = vmatpush.msra.mxu0 %v307
        %428 = vmatpush.msra.mxu0 %v305
        %429 = vmatpush.msra.mxu0 %v303
        %430 = vmatmul.f32.gmra.mxu0 %v273
        %v431 = vpop.f32.mrf.mxu0
        %v432 = vadd.f32 0.0, %v431
        %433 = vmatmul.f32.gmra.mxu0 %v276
        %v434 = vpop.f32.mrf.mxu0
        %v435 = vadd.f32 0.0, %v434
        %436 = vmatmul.f32.gmra.mxu0 %v279
        %v437 = vpop.f32.mrf.mxu0
        %v438 = vadd.f32 0.0, %v437
        %439 = vmatmul.f32.gmra.mxu0 %v282
        %v440 = vpop.f32.mrf.mxu0
        %v441 = vadd.f32 0.0, %v440
        %442 = vmatmul.f32.gmra.mxu0 %v285
        %v443 = vpop.f32.mrf.mxu0
        %v444 = vadd.f32 0.0, %v443
        %445 = vmatmul.f32.gmra.mxu0 %v288
        %v446 = vpop.f32.mrf.mxu0
        %v447 = vadd.f32 0.0, %v446
        %448 = vmatmul.f32.gmra.mxu0 %v291
        %v449 = vpop.f32.mrf.mxu0
        %v450 = vadd.f32 0.0, %v449
        %451 = vmatmul.f32.gmra.mxu0 %v294
        %v452 = vpop.f32.mrf.mxu0
        %v453 = vadd.f32 0.0, %v452
        %454 = vmatmul.f32.gmra.mxu0 %v297
        %v455 = vpop.f32.mrf.mxu0
        %v456 = vadd.f32 0.0, %v455
        %457 = vmatmul.f32.gmra.mxu0 %v300
        %v458 = vpop.f32.mrf.mxu0
        %v459 = vadd.f32 0.0, %v458
        %460 = vdwg.mxu0
        %461 = vmatpush.msra.mxu0 %v365
        %462 = vmatpush.msra.mxu0 %v363
        %463 = vmatpush.msra.mxu0 %v361
        %464 = vmatpush.msra.mxu0 %v359
        %465 = vmatpush.msra.mxu0 %v357
        %466 = vmatpush.msra.mxu0 %v355
        %467 = vmatpush.msra.mxu0 %v353
        %468 = vmatpush.msra.mxu0 %v351
        %469 = vmatpush.msra.mxu0 %v349
        %470 = vmatpush.msra.mxu0 %v347
        %471 = vmatpush.msra.mxu0 %v345
        %472 = vmatpush.msra.mxu0 %v343
        %473 = vmatpush.msra.mxu0 %v341
        %474 = vmatpush.msra.mxu0 %v339
        %475 = vmatpush.msra.mxu0 %v337
        %476 = vmatpush.msra.mxu0 %v335
        %477 = vmatmul.f32.gmra.mxu0 %v274
        %v478 = vpop.f32.mrf.mxu0
        %v479 = vadd.f32 %v432, %v478
        %480 = vmatmul.f32.gmra.mxu0 %v277
        %v481 = vpop.f32.mrf.mxu0
        %v482 = vadd.f32 %v435, %v481
        %483 = vmatmul.f32.gmra.mxu0 %v280
        %v484 = vpop.f32.mrf.mxu0
        %v485 = vadd.f32 %v438, %v484
        %486 = vmatmul.f32.gmra.mxu0 %v283
        %v487 = vpop.f32.mrf.mxu0
        %v488 = vadd.f32 %v441, %v487
        %489 = vmatmul.f32.gmra.mxu0 %v286
        %v490 = vpop.f32.mrf.mxu0
        %v491 = vadd.f32 %v444, %v490
        %492 = vmatmul.f32.gmra.mxu0 %v289
        %v493 = vpop.f32.mrf.mxu0
        %v494 = vadd.f32 %v447, %v493
        %495 = vmatmul.f32.gmra.mxu0 %v292
        %v496 = vpop.f32.mrf.mxu0
        %v497 = vadd.f32 %v450, %v496
        %498 = vmatmul.f32.gmra.mxu0 %v295
        %v499 = vpop.f32.mrf.mxu0
        %v500 = vadd.f32 %v453, %v499
        %501 = vmatmul.f32.gmra.mxu0 %v298
        %v502 = vpop.f32.mrf.mxu0
        %v503 = vadd.f32 %v456, %v502
        %504 = vmatmul.f32.gmra.mxu0 %v301
        %v505 = vpop.f32.mrf.mxu0
        %v506 = vadd.f32 %v459, %v505
        %507 = vdwg.mxu0
        %508 = vmatpush.msra.mxu0 0.0
        %509 = vmatpush.msra.mxu0 0.0
        %510 = vmatpush.msra.mxu0 0.0
        %511 = vmatpush.msra.mxu0 0.0
        %512 = vmatpush.msra.mxu0 0.0
        %513 = vmatpush.msra.mxu0 0.0
        %514 = vmatpush.msra.mxu0 0.0
        %515 = vmatpush.msra.mxu0 0.0
        %516 = vmatpush.msra.mxu0 %v381
        %517 = vmatpush.msra.mxu0 %v379
        %518 = vmatpush.msra.mxu0 %v377
        %519 = vmatpush.msra.mxu0 %v375
        %520 = vmatpush.msra.mxu0 %v373
        %521 = vmatpush.msra.mxu0 %v371
        %522 = vmatpush.msra.mxu0 %v369
        %523 = vmatpush.msra.mxu0 %v367
        %524 = vmatmul.f32.gmra.mxu0 %v385
        %v525 = vpop.f32.mrf.mxu0
        %v526 = vadd.f32 %v479, %v525
        %527 = vmatmul.f32.gmra.mxu0 %v388
        %v528 = vpop.f32.mrf.mxu0
        %v529 = vadd.f32 %v482, %v528
        %530 = vmatmul.f32.gmra.mxu0 %v391
        %v531 = vpop.f32.mrf.mxu0
        %v532 = vadd.f32 %v485, %v531
        %533 = vmatmul.f32.gmra.mxu0 %v394
        %v534 = vpop.f32.mrf.mxu0
        %v535 = vadd.f32 %v488, %v534
        %536 = vmatmul.f32.gmra.mxu0 %v397
        %v537 = vpop.f32.mrf.mxu0
        %v538 = vadd.f32 %v491, %v537
        %539 = vmatmul.f32.gmra.mxu0 %v400
        %v540 = vpop.f32.mrf.mxu0
        %v541 = vadd.f32 %v494, %v540
        %542 = vmatmul.f32.gmra.mxu0 %v403
        %v543 = vpop.f32.mrf.mxu0
        %v544 = vadd.f32 %v497, %v543
        %545 = vmatmul.f32.gmra.mxu0 %v406
        %v546 = vpop.f32.mrf.mxu0
        %v547 = vadd.f32 %v500, %v546
        %548 = vmatmul.f32.gmra.mxu0 %v409
        %v549 = vpop.f32.mrf.mxu0
        %v550 = vadd.f32 %v503, %v549
        %551 = vmatmul.f32.gmra.mxu0 %v412
        %v552 = vpop.f32.mrf.mxu0
        %v553 = vadd.f32 %v506, %v552
        %554 = vdwg.mxu0
        %555 = vmatpush.msra.mxu0 %v334
        %556 = vmatpush.msra.mxu0 %v332
        %557 = vmatpush.msra.mxu0 %v330
        %558 = vmatpush.msra.mxu0 %v328
        %559 = vmatpush.msra.mxu0 %v326
        %560 = vmatpush.msra.mxu0 %v324
        %561 = vmatpush.msra.mxu0 %v322
        %562 = vmatpush.msra.mxu0 %v320
        %563 = vmatpush.msra.mxu0 %v318
        %564 = vmatpush.msra.mxu0 %v316
        %565 = vmatpush.msra.mxu0 %v314
        %566 = vmatpush.msra.mxu0 %v312
        %567 = vmatpush.msra.mxu0 %v310
        %568 = vmatpush.msra.mxu0 %v308
        %569 = vmatpush.msra.mxu0 %v306
        %570 = vmatpush.msra.mxu0 %v304
        %571 = vmatmul.f32.gmra.mxu0 %v273
        %v572 = vpop.f32.mrf.mxu0
        %v573 = vadd.f32 0.0, %v572
        %574 = vmatmul.f32.gmra.mxu0 %v276
        %v575 = vpop.f32.mrf.mxu0
        %v576 = vadd.f32 0.0, %v575
        %577 = vmatmul.f32.gmra.mxu0 %v279
        %v578 = vpop.f32.mrf.mxu0
        %v579 = vadd.f32 0.0, %v578
        %580 = vmatmul.f32.gmra.mxu0 %v282
        %v581 = vpop.f32.mrf.mxu0
        %v582 = vadd.f32 0.0, %v581
        %583 = vmatmul.f32.gmra.mxu0 %v285
        %v584 = vpop.f32.mrf.mxu0
        %v585 = vadd.f32 0.0, %v584
        %586 = vmatmul.f32.gmra.mxu0 %v288
        %v587 = vpop.f32.mrf.mxu0
        %v588 = vadd.f32 0.0, %v587
        %589 = vmatmul.f32.gmra.mxu0 %v291
        %v590 = vpop.f32.mrf.mxu0
        %v591 = vadd.f32 0.0, %v590
        %592 = vmatmul.f32.gmra.mxu0 %v294
        %v593 = vpop.f32.mrf.mxu0
        %v594 = vadd.f32 0.0, %v593
        %595 = vmatmul.f32.gmra.mxu0 %v297
        %v596 = vpop.f32.mrf.mxu0
        %v597 = vadd.f32 0.0, %v596
        %598 = vmatmul.f32.gmra.mxu0 %v300
        %v599 = vpop.f32.mrf.mxu0
        %v600 = vadd.f32 0.0, %v599
        %601 = vdwg.mxu0
        %602 = vmatpush.msra.mxu0 %v366
        %603 = vmatpush.msra.mxu0 %v364
        %604 = vmatpush.msra.mxu0 %v362
        %605 = vmatpush.msra.mxu0 %v360
        %606 = vmatpush.msra.mxu0 %v358
        %607 = vmatpush.msra.mxu0 %v356
        %608 = vmatpush.msra.mxu0 %v354
        %609 = vmatpush.msra.mxu0 %v352
        %610 = vmatpush.msra.mxu0 %v350
        %611 = vmatpush.msra.mxu0 %v348
        %612 = vmatpush.msra.mxu0 %v346
        %613 = vmatpush.msra.mxu0 %v344
        %614 = vmatpush.msra.mxu0 %v342
        %615 = vmatpush.msra.mxu0 %v340
        %616 = vmatpush.msra.mxu0 %v338
        %617 = vmatpush.msra.mxu0 %v336
        %618 = vmatmul.f32.gmra.mxu0 %v274
        %v619 = vpop.f32.mrf.mxu0
        %v620 = vadd.f32 %v573, %v619
        %621 = vmatmul.f32.gmra.mxu0 %v277
        %v622 = vpop.f32.mrf.mxu0
        %v623 = vadd.f32 %v576, %v622
        %624 = vmatmul.f32.gmra.mxu0 %v280
        %v625 = vpop.f32.mrf.mxu0
        %v626 = vadd.f32 %v579, %v625
        %627 = vmatmul.f32.gmra.mxu0 %v283
        %v628 = vpop.f32.mrf.mxu0
        %v629 = vadd.f32 %v582, %v628
        %630 = vmatmul.f32.gmra.mxu0 %v286
        %v631 = vpop.f32.mrf.mxu0
        %v632 = vadd.f32 %v585, %v631
        %633 = vmatmul.f32.gmra.mxu0 %v289
        %v634 = vpop.f32.mrf.mxu0
        %v635 = vadd.f32 %v588, %v634
        %636 = vmatmul.f32.gmra.mxu0 %v292
        %v637 = vpop.f32.mrf.mxu0
        %v638 = vadd.f32 %v591, %v637
        %639 = vmatmul.f32.gmra.mxu0 %v295
        %v640 = vpop.f32.mrf.mxu0
        %v641 = vadd.f32 %v594, %v640
        %642 = vmatmul.f32.gmra.mxu0 %v298
        %v643 = vpop.f32.mrf.mxu0
        %v644 = vadd.f32 %v597, %v643
        %645 = vmatmul.f32.gmra.mxu0 %v301
        %v646 = vpop.f32.mrf.mxu0
        %v647 = vadd.f32 %v600, %v646
        %648 = vdwg.mxu0
        %649 = vmatpush.msra.mxu0 0.0
        %650 = vmatpush.msra.mxu0 0.0
        %651 = vmatpush.msra.mxu0 0.0
        %652 = vmatpush.msra.mxu0 0.0
        %653 = vmatpush.msra.mxu0 0.0
        %654 = vmatpush.msra.mxu0 0.0
        %655 = vmatpush.msra.mxu0 0.0
        %656 = vmatpush.msra.mxu0 0.0
        %657 = vmatpush.msra.mxu0 %v382
        %658 = vmatpush.msra.mxu0 %v380
        %659 = vmatpush.msra.mxu0 %v378
        %660 = vmatpush.msra.mxu0 %v376
        %661 = vmatpush.msra.mxu0 %v374
        %662 = vmatpush.msra.mxu0 %v372
        %663 = vmatpush.msra.mxu0 %v370
        %664 = vmatpush.msra.mxu0 %v368
        %665 = vmatmul.f32.gmra.mxu0 %v385
        %v666 = vpop.f32.mrf.mxu0
        %v667 = vadd.f32 %v620, %v666
        %668 = vmatmul.f32.gmra.mxu0 %v388
        %v669 = vpop.f32.mrf.mxu0
        %v670 = vadd.f32 %v623, %v669
        %671 = vmatmul.f32.gmra.mxu0 %v391
        %v672 = vpop.f32.mrf.mxu0
        %v673 = vadd.f32 %v626, %v672
        %674 = vmatmul.f32.gmra.mxu0 %v394
        %v675 = vpop.f32.mrf.mxu0
        %v676 = vadd.f32 %v629, %v675
        %677 = vmatmul.f32.gmra.mxu0 %v397
        %v678 = vpop.f32.mrf.mxu0
        %v679 = vadd.f32 %v632, %v678
        %680 = vmatmul.f32.gmra.mxu0 %v400
        %v681 = vpop.f32.mrf.mxu0
        %v682 = vadd.f32 %v635, %v681
        %683 = vmatmul.f32.gmra.mxu0 %v403
        %v684 = vpop.f32.mrf.mxu0
        %v685 = vadd.f32 %v638, %v684
        %686 = vmatmul.f32.gmra.mxu0 %v406
        %v687 = vpop.f32.mrf.mxu0
        %v688 = vadd.f32 %v641, %v687
        %689 = vmatmul.f32.gmra.mxu0 %v409
        %v690 = vpop.f32.mrf.mxu0
        %v691 = vadd.f32 %v644, %v690
        %692 = vmatmul.f32.gmra.mxu0 %v412
        %v693 = vpop.f32.mrf.mxu0
        %v694 = vadd.f32 %v647, %v693
        %695 = vdwg.mxu0
        %696 = vst [vmem:[%s215] sm:$0xff] %v526
        %vm697 = vcmask 556032
        %698 = vst.msk [vmem:[%s215 + $0x8] sm:$0xff] %vm697, %v667
        %699 = vst [vmem:[%s215 + $0x10] sm:$0xff] %v529
        %700 = vst.msk [vmem:[%s215 + $0x18] sm:$0xff] %vm697, %v670
        %701 = vst [vmem:[%s215 + $0x20] sm:$0xff] %v532
        %702 = vst.msk [vmem:[%s215 + $0x28] sm:$0xff] %vm697, %v673
        %703 = vst [vmem:[%s215 + $0x30] sm:$0xff] %v535
        %704 = vst.msk [vmem:[%s215 + $0x38] sm:$0xff] %vm697, %v676
        %705 = vst [vmem:[%s215 + $0x40] sm:$0xff] %v538
        %706 = vst.msk [vmem:[%s215 + $0x48] sm:$0xff] %vm697, %v679
        %707 = vst [vmem:[%s215 + $0x50] sm:$0xff] %v541
        %708 = vst.msk [vmem:[%s215 + $0x58] sm:$0xff] %vm697, %v682
        %709 = vst [vmem:[%s215 + $0x60] sm:$0xff] %v544
        %710 = vst.msk [vmem:[%s215 + $0x68] sm:$0xff] %vm697, %v685
        %711 = vst [vmem:[%s215 + $0x70] sm:$0xff] %v547
        %712 = vst.msk [vmem:[%s215 + $0x78] sm:$0xff] %vm697, %v688
        %713 = vst [vmem:[%s215 + $0x80] sm:$0xff] %v550
        %714 = vst.msk [vmem:[%s215 + $0x88] sm:$0xff] %vm697, %v691
        %715 = vst [vmem:[%s215 + $0x90] sm:$0xff] %v553
        %716 = vst.msk [vmem:[%s215 + $0x98] sm:$0xff] %vm697, %v694
        %s717 = sand.u32 %s123, 1
        %s718 = scalar_lea.sflag [#allocation3], %s717
        %s719 = sand.u32 %s123, 1
        %s720 = smul.addr %s719, 160
        %s721 = scalar_lea.vmem [#allocation2], %s720
        // Predicated region
        $region33: #{tpu_custom_call.1} parent=31 // pred_check
          %p722 = pneg %p133
        $region34: #{tpu_custom_call.1} parent=31 // pred_check_branch
          %724 = sbr.rel (%p722) target = $region36
        $region35: #{tpu_custom_call.1} parent=31 // pred_region
          %s725 = smul.u32 10, %s23
          %s726 = smul.u32 2, %s24
          %728 = vsyncadd %s718, 0
          %s729 = smul.addr %s725, 2
          %s730 = sadd.s32 %s726, %s729
          %s731 = smul.addr %s22, 40
          %s732 = sadd.s32 %s730, %s731
          %s733 = smul.addr %s732, 8
          %s734 = scalar_lea.hbm %s3, %s733
          %s735 = sshll.u32 %s721, 4
          %s736 = int_to_ptr.vmem [resolvable:$true] %s735
          %s737 = sshll.u32 %s734, 4
          %s738 = int_to_ptr.hbm [resolvable:$true] %s737
          %743 = dma.vmem_to_hbm [thread:$0]  %s736, 2560, %s738, %s718, 256, 256, 16
        $region36: #{tpu_custom_call.1} parent=31 // pred_fallthru
          _
      $region32: #{tpu_custom_call.1} parent=5 // pred_fallthru
        _
      %p744 = scmp.le.s32.totalorder 2, %s12
      // Predicated region
      $region37: #{tpu_custom_call.1} parent=5 // pred_check
        %p745 = pneg %p744
      $region38: #{tpu_custom_call.1} parent=5 // pred_check_branch
        %747 = sbr.rel (%p745) target = $region40
      $region39: #{tpu_custom_call.1} parent=5 // pred_region
        %s748 = ssub.s32 %s12, 2
        // Predicated region
        $region41: #{tpu_custom_call.1} parent=39 // pred_check
          %p749 = pneg %p139
        $region42: #{tpu_custom_call.1} parent=39 // pred_check_branch
          %751 = sbr.rel (%p749) target = $region44
        $region43: #{tpu_custom_call.1} parent=39 // pred_region
          %s752 = sand.u32 %s124, 1
          %s753 = scalar_lea.sflag [#allocation3], %s752
          %s754 = sand.u32 %s124, 1
          %s755 = smul.addr %s754, 160
          %s756 = scalar_lea.vmem [#allocation2], %s755
          %758 = dma.done %s753, 2560
        $region44: #{tpu_custom_call.1} parent=39 // pred_fallthru
          _
      $region40: #{tpu_custom_call.1} parent=5 // pred_fallthru
        _
    $region6: #{tpu_custom_call.1} parent=1 // loop_footer
      %s16 = sadd.s32 1, %s12
    $region7: #{tpu_custom_call.1} parent=1 // loop_footer_branch
      %11 = sbr.rel target = $region3
    $region8: #{tpu_custom_call.1} parent=1 // loop_exit
      _
    %759 = vsyncpa [#allocation3], 1
    %s760 = scalar_lea.sflag [#allocation3], 1
    %761 = vsyncpa %s760, 1

</llo_original>
